<compile_context>
chip_gen: v5e
topology: v5e:2x2
jax: 0.10.0
libtpu: 0.0.40
codegen_flags: <defaults>
</compile_context>

<pallas_src>
import functools

import jax
import jax.numpy as jnp
from jax import lax
from jax.experimental import pallas as pl
from jax.experimental.pallas import tpu as pltpu


def gmm_kernel(z_ref, mu_ref, logvar_ref, out_ref):
    z = z_ref[...]              # (TB, D) f32
    mu = mu_ref[...]            # (C, D)  f32
    logvar = logvar_ref[...]    # (C, D)  f32

    # ---- class-side packing (tiny: C*D elements) ----
    invvar = jnp.exp(-logvar)                       # EUP, (C, D)
    mu_invvar = mu * invvar                         # (C, D)
    # per-class bias: -0.5 * sum_d (logvar + mu^2 * invvar)
    bias = -0.5 * jnp.sum(logvar + mu * mu_invvar, axis=-1, keepdims=True)   # (C, 1)
    # Packed RHS, natural (C, 2D+1) layout; contracted on its last dim below.
    rhs = jnp.concatenate([-0.5 * invvar, mu_invvar, bias], axis=-1)         # (C, 2D+1)

    # ---- batch-side LHS ----
    ones = jnp.ones((z.shape[0], 1), dtype=z.dtype)
    lhs = jnp.concatenate([z * z, z, ones], axis=-1)                         # (TB, 2D+1)

    # Single fused MXU matmul; contracting last dims of both => no transpose.
    out_ref[...] = lax.dot_general(
        lhs, rhs,
        dimension_numbers=(((1,), (1,)), ((), ())),
        preferred_element_type=jnp.float32,
    )


@functools.partial(jax.jit, static_argnames=("tb",))
def class_conditional_gmm(z, mu, logvar, *, tb=8192):
    """Class-conditional diagonal-Gaussian log-likelihood (no -D/2*log(2*pi)
    term, exactly matching the PyTorch module). Returns (B, C) float32."""
    B, D = z.shape
    C, _ = mu.shape
    # Batch tile: full batch if small, else a multiple-of-8 tile. 8192 rows of
    # f32[D=32] is ~1 MiB per buffer -> double-buffered tiles fit comfortably
    # inside the scoped-VMEM default on v5e/v6e/v7x while being large enough to
    # amortize the ~0.35us per-grid-step overhead. (Raise tb to 32768 on v6e
    # for a bit more of the HBM roofline.)
    TB = B if B <= tb else tb
    grid = (pl.cdiv(B, TB),)

    return pl.pallas_call(
        gmm_kernel,
        out_shape=jax.ShapeDtypeStruct((B, C), jnp.float32),
        grid_spec=pltpu.PrefetchScalarGridSpec(
            num_scalar_prefetch=0,
            grid=grid,
            in_specs=[
                pl.BlockSpec((TB, D), lambda i: (i, 0)),   # z: tiled over batch
                pl.BlockSpec((C, D), lambda i: (0, 0)),    # mu: VMEM-resident
                pl.BlockSpec((C, D), lambda i: (0, 0)),    # logvar: VMEM-resident
            ],
            out_specs=pl.BlockSpec((TB, C), lambda i: (i, 0)),
        ),
        compiler_params=pltpu.CompilerParams(
            dimension_semantics=("parallel",),
        ),
    )(z, mu, logvar)


def reference(z, mu, logvar):
    z_expanded = z[:, None, :]          # (B, 1, D)
    mu_b = mu[None, :, :]               # (1, C, D)
    logvar_b = logvar[None, :, :]       # (1, C, D)
    log_p = -0.5 * (logvar_b + (z_expanded - mu_b) ** 2 / jnp.exp(logvar_b))
    return jnp.sum(log_p, axis=-1)      # (B, C)


if __name__ == "__main__":
    B, n_classes, latent_dim = 8, 10, 32

    key = jax.random.PRNGKey(0)
    kz, kmu, klv = jax.random.split(key, 3)

    # Module __init__ uses zeros for mu/logvar; use small non-trivial values so
    # the kernel is exercised meaningfully.
    z = jax.random.normal(kz, (B, latent_dim), dtype=jnp.float32)
    mu = 0.1 * jax.random.normal(kmu, (n_classes, latent_dim), dtype=jnp.float32)
    logvar = 0.1 * jax.random.normal(klv, (n_classes, latent_dim), dtype=jnp.float32)

    out = class_conditional_gmm(z, mu, logvar)
    out = jax.block_until_ready(out)

    ref = reference(z, mu, logvar)
    assert out.shape == (B, n_classes), out.shape
    assert jnp.allclose(out, ref, atol=1e-4, rtol=1e-4), \
        float(jnp.max(jnp.abs(out - ref)))

    print("KERNEL_OK")
</pallas_src>

<mosaic_0001>
module attributes {stable_mosaic.version = 11 : i64} {
  func.func @gmm_kernel(%arg0: i32, %arg1: memref<8x32xf32, #tpu.memory_space<vmem>>, %arg2: memref<10x32xf32, #tpu.memory_space<vmem>>, %arg3: memref<10x32xf32, #tpu.memory_space<vmem>>, %arg4: memref<8x10xf32, #tpu.memory_space<vmem>>) attributes {dimension_semantics = [#tpu.dimension_semantics<parallel>], iteration_bounds = array<i64: 1>, scalar_prefetch = 0 : i64, scratch_operands = 0 : i64, tpu.core_type = #tpu.core_type<tc>, window_params = [{transform_indices = @transform_0, window_bounds = array<i64: 8, 32>}, {pipeline_mode = #tpu.pipeline_mode<synchronous>, transform_indices = @transform_1, window_bounds = array<i64: 10, 32>}, {pipeline_mode = #tpu.pipeline_mode<synchronous>, transform_indices = @transform_2, window_bounds = array<i64: 10, 32>}, {transform_indices = @transform_3, window_bounds = array<i64: 8, 10>}]} {
    %c0 = arith.constant 0 : index
    %c0_0 = arith.constant 0 : index
    %0 = vector.load %arg1[%c0, %c0_0] : memref<8x32xf32, #tpu.memory_space<vmem>>, vector<8x32xf32>
    %c0_1 = arith.constant 0 : index
    %c0_2 = arith.constant 0 : index
    %1 = vector.load %arg2[%c0_1, %c0_2] : memref<10x32xf32, #tpu.memory_space<vmem>>, vector<10x32xf32>
    %c0_3 = arith.constant 0 : index
    %c0_4 = arith.constant 0 : index
    %2 = vector.load %arg3[%c0_3, %c0_4] : memref<10x32xf32, #tpu.memory_space<vmem>>, vector<10x32xf32>
    %cst = arith.constant 0.000000e+00 : f32
    %3 = vector.broadcast %cst : f32 to vector<10x32xf32>
    %4 = arith.subf %3, %2 : vector<10x32xf32>
    %5 = math.exp %4 : vector<10x32xf32>
    %6 = arith.mulf %1, %5 : vector<10x32xf32>
    %7 = arith.mulf %1, %6 : vector<10x32xf32>
    %8 = arith.addf %2, %7 : vector<10x32xf32>
    %cst_5 = arith.constant dense<0.000000e+00> : vector<10xf32>
    %9 = vector.multi_reduction <add>, %8, %cst_5 [1] : vector<10x32xf32> to vector<10xf32>
    %10 = vector.shape_cast %9 : vector<10xf32> to vector<10x1xf32>
    %cst_6 = arith.constant -5.000000e-01 : f32
    %11 = vector.broadcast %cst_6 : f32 to vector<10x1xf32>
    %12 = arith.mulf %11, %10 : vector<10x1xf32>
    %cst_7 = arith.constant -5.000000e-01 : f32
    %13 = vector.broadcast %cst_7 : f32 to vector<10x32xf32>
    %14 = arith.mulf %13, %5 : vector<10x32xf32>
    %15 = tpu.concatenate %14, %6, %12 in 1 : vector<10x32xf32>, vector<10x32xf32>, vector<10x1xf32> -> vector<10x65xf32>
    %cst_8 = arith.constant 1.000000e+00 : f32
    %16 = vector.broadcast %cst_8 : f32 to vector<8x1xf32>
    %17 = arith.mulf %0, %0 : vector<8x32xf32>
    %18 = tpu.concatenate %17, %0, %16 in 1 : vector<8x32xf32>, vector<8x32xf32>, vector<8x1xf32> -> vector<8x65xf32>
    %cst_9 = arith.constant dense<0.000000e+00> : vector<8x10xf32>
    %19 = tpu.matmul %18, %15, %cst_9 {dimension_numbers = #tpu.dot_dimension_numbers<[1], [1], [0], [0], [0, 0, 1, 0], [], []>} : vector<8x65xf32>, vector<10x65xf32>, vector<8x10xf32> -> vector<8x10xf32>
    %c0_10 = arith.constant 0 : index
    %c0_11 = arith.constant 0 : index
    %20 = vector.load %arg4[%c0_10, %c0_11] : memref<8x10xf32, #tpu.memory_space<vmem>>, vector<8x10xf32>
    tpu.vector_store %arg4[%c0_10, %c0_11], %19 {strides = array<i32>} : memref<8x10xf32, #tpu.memory_space<vmem>>, vector<8x10xf32>,
    return
  }
  func.func @transform_0(%arg0: i32) -> (i32, i32) {
    %c0_i32 = arith.constant 0 : i32
    %c0_i32_0 = arith.constant 0 : i32
    return %arg0, %c0_i32 : i32, i32
  }
  func.func @transform_1(%arg0: i32) -> (i32, i32) {
    %c0_i32 = arith.constant 0 : i32
    %c0_i32_0 = arith.constant 0 : i32
    %c0_i32_1 = arith.constant 0 : i32
    return %c0_i32, %c0_i32_0 : i32, i32
  }
  func.func @transform_2(%arg0: i32) -> (i32, i32) {
    %c0_i32 = arith.constant 0 : i32
    %c0_i32_0 = arith.constant 0 : i32
    %c0_i32_1 = arith.constant 0 : i32
    return %c0_i32, %c0_i32_0 : i32, i32
  }
  func.func @transform_3(%arg0: i32) -> (i32, i32) {
    %c0_i32 = arith.constant 0 : i32
    %c0_i32_0 = arith.constant 0 : i32
    return %arg0, %c0_i32 : i32, i32
  }
}

</mosaic_0001>

<llo_original>
// kernel: class_conditional_gmm.1
$region0: #{class_conditional_gmm.1}
  #allocation0 [shape = 'u32[]', space=smem, size = 0x4, offset = 0x4, fixed_abs, tag = 'smem constant byte address 0x4 - core index']
  #allocation1 [shape = 'u32[72,128]{1,0:T(1,128)}', space=vmem, size = 0x9000, scoped, tag = 'internal scratch']
  %s0 = inlined_call_operand.hbm [shape: f32[8,32], index: 0, kind: input, shape index: {}]
  %s1 = inlined_call_operand.hbm [shape: f32[10,32], index: 1, kind: input, shape index: {}]
  %s2 = inlined_call_operand.hbm [shape: f32[10,32], index: 2, kind: input, shape index: {}]
  %s3 = inlined_call_operand.hbm [shape: f32[8,10], index: 3, kind: output, shape index: {}]
  %s4 = sld [smem:[#allocation0]]
  $region34: #{class_conditional_gmm.1} parent=0
    _
  %s6 = ssub.s32 1, %s4
  %s7 = scalar_select 0, %s6, %s4
  $region1: #{class_conditional_gmm.1} parent=0
    #allocation2 [shape = 'u8[4096]{0}', space=vmem, size = 0x1000, scoped, tag = 'input window, operand 0, single buffered']
    #allocation3 [shape = 's32[1]{0}', space=sflag, size = 0x4, scoped, tag = 'scoped memory for class_conditional_gmm.1']
    #allocation4 [shape = 's32[1]{0}', space=sflag, size = 0x4, scoped, tag = 'scoped memory for class_conditional_gmm.1']
    #allocation5 [shape = 'u8[8192]{0}', space=vmem, size = 0x2000, scoped, tag = 'input window, operand 1, single buffered']
    #allocation6 [shape = 's32[1]{0}', space=sflag, size = 0x4, scoped, tag = 'scoped memory for class_conditional_gmm.1']
    #allocation7 [shape = 'u8[8192]{0}', space=vmem, size = 0x2000, scoped, tag = 'input window, operand 2, single buffered']
    #allocation8 [shape = 'u8[4096]{0}', space=vmem, size = 0x1000, scoped, tag = 'output window, operand 0, single buffered']
    %8 = vsyncpa [#allocation3], 0
    %9 = vsyncpa [#allocation6], 0
    %10 = vsyncpa [#allocation4], 0
    // Predicated region
    $region2: #{class_conditional_gmm.1} parent=1 // pred_check
      _
    $region3: #{class_conditional_gmm.1} parent=1 // pred_check_branch
      %12 = sbr.rel (0) target = $region5
    $region4: #{class_conditional_gmm.1} parent=1 // pred_region
      %14 = vsyncadd [#allocation3], 0
      %s16 = sshll.u32 %s0, 4
      %s17 = int_to_ptr.hbm [resolvable:$true] %s16
      %s18 = sshll.u32 [#allocation2], 4
      %s19 = int_to_ptr.vmem [resolvable:$true] %s18
      %21 = dma.hbm_to_vmem [thread:$0]  %s17, 128, %s19, [#allocation3]
    $region5: #{class_conditional_gmm.1} parent=1 // pred_fallthru
      _
    // Predicated region
    $region6: #{class_conditional_gmm.1} parent=1 // pred_check
      _
    $region7: #{class_conditional_gmm.1} parent=1 // pred_check_branch
      %23 = sbr.rel (0) target = $region9
    $region8: #{class_conditional_gmm.1} parent=1 // pred_region
      %25 = vsyncadd [#allocation6], 0
      %s26 = sshll.u32 %s1, 4
      %s27 = int_to_ptr.hbm [resolvable:$true] %s26
      %s28 = sshll.u32 [#allocation5], 4
      %s29 = int_to_ptr.vmem [resolvable:$true] %s28
      %34 = dma.hbm_to_vmem [thread:$0]  %s27, 256, %s29, [#allocation6], 128, 128, 8
    $region9: #{class_conditional_gmm.1} parent=1 // pred_fallthru
      _
    // Predicated region
    $region10: #{class_conditional_gmm.1} parent=1 // pred_check
      _
    $region11: #{class_conditional_gmm.1} parent=1 // pred_check_branch
      %36 = sbr.rel (0) target = $region13
    $region12: #{class_conditional_gmm.1} parent=1 // pred_region
      %38 = vsyncadd [#allocation6], 0
      %s39 = sshll.u32 %s2, 4
      %s40 = int_to_ptr.hbm [resolvable:$true] %s39
      %s41 = sshll.u32 [#allocation7], 4
      %s42 = int_to_ptr.vmem [resolvable:$true] %s41
      %47 = dma.hbm_to_vmem [thread:$0]  %s40, 256, %s42, [#allocation6], 128, 128, 8
    $region13: #{class_conditional_gmm.1} parent=1 // pred_fallthru
      _
    // Predicated region
    $region14: #{class_conditional_gmm.1} parent=1 // pred_check
      _
    $region15: #{class_conditional_gmm.1} parent=1 // pred_check_branch
      %49 = sbr.rel (0) target = $region17
    $region16: #{class_conditional_gmm.1} parent=1 // pred_region
      %51 = dma.done [#allocation3], 128
    $region17: #{class_conditional_gmm.1} parent=1 // pred_fallthru
      _
    // Predicated region
    $region18: #{class_conditional_gmm.1} parent=1 // pred_check
      _
    $region19: #{class_conditional_gmm.1} parent=1 // pred_check_branch
      %53 = sbr.rel (0) target = $region21
    $region20: #{class_conditional_gmm.1} parent=1 // pred_region
      %55 = dma.done [#allocation6], 256
    $region21: #{class_conditional_gmm.1} parent=1 // pred_fallthru
      _
    // Predicated region
    $region22: #{class_conditional_gmm.1} parent=1 // pred_check
      _
    $region23: #{class_conditional_gmm.1} parent=1 // pred_check_branch
      %57 = sbr.rel (0) target = $region25
    $region24: #{class_conditional_gmm.1} parent=1 // pred_region
      %59 = dma.done [#allocation6], 256
    $region25: #{class_conditional_gmm.1} parent=1 // pred_fallthru
      _
    %v60 = vld [vmem:[#allocation2] sm:$0xff]
    %v61 = vld [vmem:[#allocation5] sm:$0xff]
    %v62 = vld [vmem:[#allocation5 + $0x8] sm:$0x3]
    %v63 = vld [vmem:[#allocation7] sm:$0xff]
    %v64 = vld [vmem:[#allocation7 + $0x8] sm:$0x3]
    %v65 = vsub.f32 0.0, %v63
    %v66 = vsub.f32 0.0, %v64
    %v67 = vmul.f32 %v65, 1.442695
    %v68 = vpow.pop %v67
    %v69 = vmul.f32 %v66, 1.442695
    %v70 = vpow.pop %v69
    %v71 = vmul.f32 %v61, %v68
    %v72 = vmul.f32 %v62, %v70
    %v73 = vmul.f32 %v61, %v71
    %v74 = vmul.f32 %v62, %v72
    %v75 = vadd.f32 %v63, %v73
    %v76 = vadd.f32 %v64, %v74
    %vm77 = vcmask 261120
    %v78 = vsel %vm77, %v75, 0.0
    %79 = vadd.xlane.f32.xlu0 %v78
    %v80 = vpop.xlane.xlu0 %79
    %vm81 = vcmask 254976
    %v82 = vsel %vm81, %v76, 0.0
    %83 = vadd.xlane.f32.xlu0 %v82
    %v84 = vpop.xlane.xlu0 %83
    %v85 = vmul.f32 %v80, -0.5
    %v86 = vmul.f32 %v84, -0.5
    %v87 = vmul.f32 %v68, -0.5
    %v88 = vmul.f32 %v70, -0.5
    %91 = vrot.lane.b32.xlu0 %v71, 32
    %v92 = vpop.permute.xlu0 %91
    %93 = vrot.lane.b32.xlu0 %v72, 32
    %v94 = vpop.permute.xlu0 %93
    %v97 = vsel %vm77, %v87, %v92
    %v98 = vsel %vm77, %v88, %v94
    %vm99 = vcmask 523264
    %v100 = vsel %vm99, %v97, %v85
    %v101 = vsel %vm99, %v98, %v86
    %v102 = vmul.f32 %v60, %v60
    %104 = vrot.lane.b32.xlu0 %v60, 32
    %v105 = vpop.permute.xlu0 %104
    %v107 = vsel %vm77, %v102, %v105
    %v108 = vsel %vm99, %v107, 1.0
    %vm109 = vcmask 531456
    %v111 = vsel %vm109, %v108, 0
    %v114 = vsel %vm109, %v100, 0
    %v117 = vsel %vm109, %v101, 0
    %119 = vmatpush.xpose.msra.mxu0 0.0
    %120 = vmatpush.xpose.msra.mxu0 0.0
    %121 = vmatpush.xpose.msra.mxu0 0.0
    %122 = vmatpush.xpose.msra.mxu0 0.0
    %123 = vmatpush.xpose.msra.mxu0 0.0
    %124 = vmatpush.xpose.msra.mxu0 0.0
    %125 = vmatpush.xpose.msra.mxu0 0.0
    %126 = vmatpush.xpose.msra.mxu0 0.0
    %127 = vmatpush.xpose.msra.mxu0 0.0
    %128 = vmatpush.xpose.msra.mxu0 0.0
    %129 = vmatpush.xpose.msra.mxu0 0.0
    %130 = vmatpush.xpose.msra.mxu0 0.0
    %131 = vmatpush.xpose.msra.mxu0 0.0
    %132 = vmatpush.xpose.msra.mxu0 0.0
    %133 = vmatpush.xpose.msra.mxu0 %v117
    %134 = vmatpush.xpose.msra.mxu0 %v114
    %135 = vmatmul.f32.gmra.mxu0 %v111
    %v136 = vpop.f32.mrf.mxu0
    %v137 = vadd.f32 0.0, %v136
    %138 = vdwg.mxu0
    %vm139 = vcmask 80896
    %140 = vst.msk [vmem:[#allocation8] sm:$0xff] %vm139, %v137
    // Predicated region
    $region26: #{class_conditional_gmm.1} parent=1 // pred_check
      _
    $region27: #{class_conditional_gmm.1} parent=1 // pred_check_branch
      %142 = sbr.rel (0) target = $region29
    $region28: #{class_conditional_gmm.1} parent=1 // pred_region
      %144 = vsyncadd [#allocation4], 0
      %s146 = sshll.u32 [#allocation8], 4
      %s147 = int_to_ptr.vmem [resolvable:$true] %s146
      %s148 = sshll.u32 %s3, 4
      %s149 = int_to_ptr.hbm [resolvable:$true] %s148
      %151 = dma.vmem_to_hbm [thread:$0]  %s147, 128, %s149, [#allocation4]
    $region29: #{class_conditional_gmm.1} parent=1 // pred_fallthru
      _
    // Predicated region
    $region30: #{class_conditional_gmm.1} parent=1 // pred_check
      _
    $region31: #{class_conditional_gmm.1} parent=1 // pred_check_branch
      %153 = sbr.rel (0) target = $region33
    $region32: #{class_conditional_gmm.1} parent=1 // pred_region
      %155 = dma.done [#allocation4], 128
    $region33: #{class_conditional_gmm.1} parent=1 // pred_fallthru
      _
    %156 = vsyncpa [#allocation3], 1
    %157 = vsyncpa [#allocation6], 1
    %158 = vsyncpa [#allocation4], 1

</llo_original>
